<compile_context>
chip_gen: v7x
topology: tpu7x:2x2x1
jax: 0.10.0
libtpu: 0.0.40
codegen_flags: <defaults>
</compile_context>

<pallas_src>
import functools
import math

import jax
import jax.numpy as jnp
from jax.experimental import pallas as pl
from jax.experimental.pallas import tpu as pltpu

_LANE = 128


def _round_up(a, b):
    return -(-a // b) * b


def _vmem_capacity_bytes():
    """Physical per-core VMEM, with a conservative fallback (v7x = 64 MiB)."""
    try:
        info = pltpu.get_tpu_info()
        for name in ("vmem_capacity_bytes", "vmem_size_bytes", "vmem_bytes"):
            v = getattr(info, name, None)
            if v:
                return int(v)
    except Exception:
        pass
    return 64 * 1024 * 1024


def _select_tiles(B, C, hw, itemsize, mid, E):
    """Pick (b_tile, hw_tile, vmem_limit_bytes) from this generation's VMEM budget.

    Goals (perf review):
      * never pad / re-copy x in HBM: b_tile divides B, ragged hw handled in-kernel
      * move >= ~4 MiB of x per grid step; prefer hw_tile == full H*W
      * keep 2x double-buffered x tiles + accumulator + weights under ~3/4 of VMEM
      * keep grid[0] >= 2 whenever B >= 2 so both v7x TensorCores stream x
    """
    cap = _vmem_capacity_bytes()
    budget = (3 * cap) // 4                    # ~48 MiB on v7x, ~96 MiB on v5e/v6e

    sub = 8 * max(1, 4 // itemsize)            # sublane multiple for x's dtype
    c_pad_x = _round_up(C, sub)                # VMEM layout padding of the x tile
    c_pad_acc = _round_up(C, 8)
    w_bytes = 2 * 4 * (_round_up(C, 8) * _round_up(mid, _LANE)
                       + _round_up(mid, 8) * _round_up(E, _LANE))
    fixed = w_bytes + (2 << 20)                # weights (double-buffered) + slack

    def vmem_cost(b_tile, hw_tile):
        x_buf = b_tile * c_pad_x * _round_up(hw_tile, _LANE) * itemsize
        acc = b_tile * c_pad_acc * _LANE * 4
        out_buf = 2 * _round_up(b_tile, 8) * _round_up(E, _LANE) * 4
        return 2 * x_buf + acc + out_buf + fixed

    def best_hw_tile(b_tile):
        if vmem_cost(b_tile, hw) <= budget:
            return hw                          # full spatial extent: 1 DMA run per (b, c) row
        if hw < _LANE:
            return None                        # cannot shrink further; b_tile too large
        x_unit = 2 * b_tile * c_pad_x * _LANE * itemsize
        groups = (budget - vmem_cost(b_tile, 0)) // x_unit
        if groups < 1:
            return None
        return int(min(groups, hw // _LANE)) * _LANE

    candidates = []
    for d in (d for d in range(1, B + 1) if B % d == 0):
        ht = best_hw_tile(d)
        if ht is not None:
            step_bytes = d * C * min(ht, hw) * itemsize   # actual HBM bytes per grid step
            candidates.append((d, ht, step_bytes))

    if not candidates:                         # absurdly large C: smallest possible tile
        return 1, (hw if hw < _LANE else _LANE), cap

    preferred = [c for c in candidates if B // c[0] >= 2] or candidates
    target = 4 << 20                           # >= 4 MiB/step amortizes ~0.35 us pipeline overhead
    meets = [c for c in preferred if c[2] >= target]
    if meets:
        b_tile, hw_tile, _ = min(meets, key=lambda c: c[0])   # more steps -> better DMA overlap
    else:
        b_tile, hw_tile, _ = max(preferred, key=lambda c: c[2])
    return b_tile, hw_tile, budget


def _attention_kernel(x_ref, w1_ref, w2_ref, o_ref, acc_ref, *,
                      inv_hw, hw, hw_tile, n_groups, rem, mask_tail):
    # x_ref  : (b_tile, C, hw_tile)  input tile in its native dtype (f32 / bf16 / ...)
    # w1_ref : (C, mid)              fc[0] weight, (in, out) layout, f32
    # w2_ref : (mid, E)              fc[2] weight, (in, out) layout, f32
    # o_ref  : (b_tile, E)           output tile (resident across the spatial axis)
    # acc_ref: (b_tile, C, 128) f32  lane-wide partial-sum accumulator
    s = pl.program_id(1)

    @pl.when(s == 0)
    def _init():
        acc_ref[...] = jnp.zeros_like(acc_ref)

    # --- streaming phase: fold 128-lane groups of x straight into acc_ref --------
    # No full-tile f32 materialization; acc_ref accumulation bounds vreg live ranges.
    if n_groups > 0:
        def _add_group(k, carry):
            start = pl.multiple_of(k * _LANE, _LANE)
            v = x_ref[:, :, pl.ds(start, _LANE)].astype(jnp.float32)
            if mask_tail:
                # Ragged spatial tail: zero out lanes past the true H*W (the last
                # partial block's out-of-range region holds unspecified data).
                gidx = (s * hw_tile + start
                        + jax.lax.broadcasted_iota(jnp.int32, v.shape, 2))
                v = jnp.where(gidx < hw, v, 0.0)
            acc_ref[...] += v
            return carry

        jax.lax.fori_loop(0, n_groups, _add_group, 0, unroll=min(8, n_groups))

    # --- epilogue: once per batch tile (pool finalize + fc + exact softmax) ------
    @pl.when(s == pl.num_programs(1) - 1)
    def _epilogue():
        pooled = jnp.sum(acc_ref[...], axis=-1)                       # (b_tile, C), XLU
        if rem > 0:
            # Single full-spatial tile whose width is not a lane multiple:
            # static sub-128 tail slice, reduced once here.
            tail = x_ref[:, :, pl.ds(n_groups * _LANE, rem)].astype(jnp.float32)
            pooled = pooled + jnp.sum(tail, axis=-1)
        y = pooled * inv_hw                                           # AdaptiveAvgPool2d(1)
        h = jnp.dot(y, w1_ref[...], preferred_element_type=jnp.float32)
        h = jnp.maximum(h, 0.0)                                       # ReLU
        z = jnp.dot(h, w2_ref[...], preferred_element_type=jnp.float32)
        # softmax_T (T unused in the reference). Row-max subtraction is
        # mathematically identical and overflow-safe; division is exact.
        z = z - jnp.max(z, axis=-1, keepdims=True)
        e = jnp.exp(z)
        o_ref[...] = (e / jnp.sum(e, axis=-1, keepdims=True)).astype(o_ref.dtype)


def prepare_weights(w1, w2):
    """One-time: transpose torch-layout weights (out, in) -> (in, out), f32."""
    return jnp.transpose(w1).astype(jnp.float32), jnp.transpose(w2).astype(jnp.float32)


def attention_forward(x, w1_t, w2_t, T=1.0, *, b_tile=None, hw_tile=None):
    """DyConv `attention.forward(x, T)`.

    x    : (B, C, H, W) NCHW, any float dtype (bf16 is streamed as-is -> half HBM bytes).
    w1_t : (C, mid)  fc[0] weight pre-transposed by prepare_weights().
    w2_t : (mid, E)  fc[2] weight pre-transposed.
    T    : accepted for API parity; the reference softmax_T ignores it.
    Returns (B, E) float32 expert gate weights.
    """
    B, C, H, W = x.shape
    C1, mid = w1_t.shape
    mid2, E = w2_t.shape
    assert C1 == C and mid2 == mid
    hw = H * W
    itemsize = jnp.dtype(x.dtype).itemsize

    auto_b, auto_hw, vmem_limit = _select_tiles(B, C, hw, itemsize, mid, E)
    b_tile = auto_b if b_tile is None else b_tile
    hw_tile = auto_hw if hw_tile is None else min(int(hw_tile), hw)
    assert B % b_tile == 0, "b_tile must divide B (no batch padding in HBM)"
    assert hw_tile == hw or hw_tile % _LANE == 0, "partial spatial tiles must be lane-aligned"

    if hw_tile == hw:
        n_spatial = 1
        n_groups, rem = divmod(hw, _LANE)
        mask_tail = False
    else:
        n_spatial = pl.cdiv(hw, hw_tile)
        n_groups, rem = hw_tile // _LANE, 0
        mask_tail = (hw % hw_tile) != 0

    grid = (B // b_tile, n_spatial)
    x3 = x.reshape(B, C, hw)   # contiguous NCHW reshape: no copy, no HBM padding pass

    kernel = functools.partial(
        _attention_kernel,
        inv_hw=1.0 / float(hw), hw=hw, hw_tile=hw_tile,
        n_groups=n_groups, rem=rem, mask_tail=mask_tail)

    out = pl.pallas_call(
        kernel,
        out_shape=jax.ShapeDtypeStruct((grid[0], b_tile, E), jnp.float32),
        grid_spec=pltpu.PrefetchScalarGridSpec(
            num_scalar_prefetch=0,
            grid=grid,
            in_specs=[
                pl.BlockSpec((b_tile, C, hw_tile), lambda b, s: (b, 0, s)),
                pl.BlockSpec((C, mid), lambda b, s: (0, 0)),
                pl.BlockSpec((mid, E), lambda b, s: (0, 0)),
            ],
            # (num_batch_tiles, b_tile, E) layout: block dims == full array dims,
            # so any b_tile works without alignment padding; reshaped below (free).
            out_specs=pl.BlockSpec((None, b_tile, E), lambda b, s: (b, 0, 0)),
            scratch_shapes=[pltpu.VMEM((b_tile, C, _LANE), jnp.float32)],
        ),
        compiler_params=pltpu.CompilerParams(
            dimension_semantics=("parallel", "arbitrary"),
            vmem_limit_bytes=int(vmem_limit),
        ),
    )(x3, w1_t, w2_t)

    return out.reshape(B, E)


def reference_forward(x, w1, w2):
    """Pure-JAX reference mirroring the PyTorch module, for verification."""
    B, C, H, W = x.shape
    y = jnp.mean(x.astype(jnp.float32).reshape(B, C, -1), axis=-1)
    y = jnp.maximum(y @ w1.T, 0.0)
    y = y @ w2.T
    e = jnp.exp(y)
    return e / jnp.sum(e, axis=1, keepdims=True)


if __name__ == "__main__":
    key = jax.random.PRNGKey(0)
    k = jax.random.split(key, 8)

    # --- config 1: module defaults at small shape (B=2, C=4, 16x16) ------------
    B, C, H, W = 2, 4, 16, 16
    E = 8                       # num_experts
    reduction = 2
    mid = math.ceil(C / reduction)

    x = jax.random.normal(k[0], (B, C, H, W), dtype=jnp.float32)
    w1 = jax.random.normal(k[1], (mid, C), dtype=jnp.float32) * math.sqrt(2.0 / C)
    w2 = jax.random.normal(k[2], (E, mid), dtype=jnp.float32) * math.sqrt(2.0 / mid)
    w1_t, w2_t = prepare_weights(w1, w2)       # hoisted one-time transpose

    out = jax.block_until_ready(attention_forward(x, w1_t, w2_t, T=1.0))
    ref = reference_forward(x, w1, w2)
    assert out.shape == (B, E)
    # tolerance covers MXU-vs-XLA f32 matmul precision differences only
    assert jnp.allclose(out, ref, atol=2e-3, rtol=2e-3), (out, ref)
    # exact (non-approx) softmax normalization: rows sum to 1 to f32 rounding
    assert jnp.allclose(jnp.sum(out, axis=1), jnp.ones((B,)), atol=1e-5)

    # --- config 2: multi-step spatial reduction with a ragged (masked) tail -----
    # hw = 18*18 = 324, forced hw_tile=128 -> 3 spatial steps, last one 68 lanes valid.
    B2, C2, H2, W2 = 2, 8, 18, 18
    mid2 = math.ceil(C2 / reduction)
    x2 = jax.random.normal(k[3], (B2, C2, H2, W2), dtype=jnp.float32)
    w1b = jax.random.normal(k[4], (mid2, C2), dtype=jnp.float32) * math.sqrt(2.0 / C2)
    w2b = jax.random.normal(k[5], (E, mid2), dtype=jnp.float32) * math.sqrt(2.0 / mid2)
    w1b_t, w2b_t = prepare_weights(w1b, w2b)

    out2 = jax.block_until_ready(
        attention_forward(x2, w1b_t, w2b_t, T=1.0, b_tile=1, hw_tile=128))
    ref2 = reference_forward(x2, w1b, w2b)
    assert jnp.allclose(out2, ref2, atol=2e-3, rtol=2e-3), (out2, ref2)

    # --- config 3: bf16 activations streamed directly (halves HBM bytes) --------
    # Auto tiling -> single full-spatial tile with a sub-128 static tail (rem=68).
    out3 = jax.block_until_ready(
        attention_forward(x2.astype(jnp.bfloat16), w1b_t, w2b_t, T=1.0))
    ref3 = reference_forward(x2.astype(jnp.bfloat16), w1b, w2b)
    assert jnp.allclose(out3, ref3, atol=2e-2, rtol=2e-2), (out3, ref3)

    print("KERNEL_OK")
</pallas_src>

<mosaic_0001>
module attributes {stable_mosaic.version = 11 : i64} {
  func.func @_attention_kernel(%arg0: i32, %arg1: i32, %arg2: memref<1x4x256xf32, #tpu.memory_space<vmem>>, %arg3: memref<4x2xf32, #tpu.memory_space<vmem>>, %arg4: memref<2x8xf32, #tpu.memory_space<vmem>>, %arg5: memref<1x1x8xf32, #tpu.memory_space<vmem>>, %arg6: memref<1x4x128xf32, #tpu.memory_space<vmem>>) attributes {dimension_semantics = [#tpu.dimension_semantics<parallel>, #tpu.dimension_semantics<arbitrary>], iteration_bounds = array<i64: 2, 1>, scalar_prefetch = 0 : i64, scratch_operands = 1 : i64, tpu.core_type = #tpu.core_type<tc>, window_params = [{transform_indices = @transform_0, window_bounds = array<i64: 1, 4, 256>}, {pipeline_mode = #tpu.pipeline_mode<synchronous>, transform_indices = @transform_1, window_bounds = array<i64: 4, 2>}, {pipeline_mode = #tpu.pipeline_mode<synchronous>, transform_indices = @transform_2, window_bounds = array<i64: 2, 8>}, {transform_indices = @transform_3, window_bounds = array<i64: 1, 1, 8>}]} {
    %c0_i32 = arith.constant 0 : i32
    %0 = arith.cmpi eq, %arg1, %c0_i32 : i32
    %1 = arith.extui %0 : i1 to i32
    %c0_i32_0 = arith.constant 0 : i32
    %2 = arith.cmpi ne, %1, %c0_i32_0 : i32
    scf.if %2 {
      %cst = arith.constant 0.000000e+00 : f32
      %20 = vector.broadcast %cst : f32 to vector<1x4x128xf32>
      %c0_20 = arith.constant 0 : index
      %c0_21 = arith.constant 0 : index
      %c0_22 = arith.constant 0 : index
      %21 = vector.load %arg6[%c0_20, %c0_21, %c0_22] : memref<1x4x128xf32, #tpu.memory_space<vmem>>, vector<1x4x128xf32>
      tpu.vector_store %arg6[%c0_20, %c0_21, %c0_22], %20 {strides = array<i32>} : memref<1x4x128xf32, #tpu.memory_space<vmem>>, vector<1x4x128xf32>,
    } else {
    }
    %c0_i32_1 = arith.constant 0 : i32
    %c128_i32 = arith.constant 128 : i32
    %3 = arith.muli %c0_i32_1, %c128_i32 : i32
    %4 = tpu.assume_multiple %3, 128 : i32
    %c0 = arith.constant 0 : index
    %c0_2 = arith.constant 0 : index
    %5 = arith.index_cast %4 : i32 to index
    %6 = vector.load %arg2[%c0, %c0_2, %5] : memref<1x4x256xf32, #tpu.memory_space<vmem>>, vector<1x4x128xf32>
    %c0_3 = arith.constant 0 : index
    %c0_4 = arith.constant 0 : index
    %c0_5 = arith.constant 0 : index
    %7 = vector.load %arg6[%c0_3, %c0_4, %c0_5] : memref<1x4x128xf32, #tpu.memory_space<vmem>>, vector<1x4x128xf32>
    %8 = arith.addf %7, %6 : vector<1x4x128xf32>
    %c0_6 = arith.constant 0 : index
    %c0_7 = arith.constant 0 : index
    %c0_8 = arith.constant 0 : index
    %9 = vector.load %arg6[%c0_6, %c0_7, %c0_8] : memref<1x4x128xf32, #tpu.memory_space<vmem>>, vector<1x4x128xf32>
    tpu.vector_store %arg6[%c0_6, %c0_7, %c0_8], %8 {strides = array<i32>} : memref<1x4x128xf32, #tpu.memory_space<vmem>>, vector<1x4x128xf32>,
    %c1_i32 = arith.constant 1 : i32
    %c128_i32_9 = arith.constant 128 : i32
    %10 = arith.muli %c1_i32, %c128_i32_9 : i32
    %11 = tpu.assume_multiple %10, 128 : i32
    %c0_10 = arith.constant 0 : index
    %c0_11 = arith.constant 0 : index
    %12 = arith.index_cast %11 : i32 to index
    %13 = vector.load %arg2[%c0_10, %c0_11, %12] : memref<1x4x256xf32, #tpu.memory_space<vmem>>, vector<1x4x128xf32>
    %c0_12 = arith.constant 0 : index
    %c0_13 = arith.constant 0 : index
    %c0_14 = arith.constant 0 : index
    %14 = vector.load %arg6[%c0_12, %c0_13, %c0_14] : memref<1x4x128xf32, #tpu.memory_space<vmem>>, vector<1x4x128xf32>
    %15 = arith.addf %14, %13 : vector<1x4x128xf32>
    %c0_15 = arith.constant 0 : index
    %c0_16 = arith.constant 0 : index
    %c0_17 = arith.constant 0 : index
    %16 = vector.load %arg6[%c0_15, %c0_16, %c0_17] : memref<1x4x128xf32, #tpu.memory_space<vmem>>, vector<1x4x128xf32>
    tpu.vector_store %arg6[%c0_15, %c0_16, %c0_17], %15 {strides = array<i32>} : memref<1x4x128xf32, #tpu.memory_space<vmem>>, vector<1x4x128xf32>,
    %c2_i32 = arith.constant 2 : i32
    %c0_i32_18 = arith.constant 0 : i32
    %17 = arith.cmpi eq, %arg1, %c0_i32_18 : i32
    %18 = arith.extui %17 : i1 to i32
    %c0_i32_19 = arith.constant 0 : i32
    %19 = arith.cmpi ne, %18, %c0_i32_19 : i32
    scf.if %19 {
      %c0_20 = arith.constant 0 : index
      %c0_21 = arith.constant 0 : index
      %c0_22 = arith.constant 0 : index
      %20 = vector.load %arg6[%c0_20, %c0_21, %c0_22] : memref<1x4x128xf32, #tpu.memory_space<vmem>>, vector<1x4x128xf32>
      %cst = arith.constant dense<0.000000e+00> : vector<1x4xf32>
      %21 = vector.multi_reduction <add>, %20, %cst [2] : vector<1x4x128xf32> to vector<1x4xf32>
      %cst_23 = arith.constant 3.906250e-03 : f32
      %22 = vector.broadcast %cst_23 : f32 to vector<1x4xf32>
      %23 = arith.mulf %21, %22 : vector<1x4xf32>
      %c0_24 = arith.constant 0 : index
      %c0_25 = arith.constant 0 : index
      %24 = vector.load %arg3[%c0_24, %c0_25] : memref<4x2xf32, #tpu.memory_space<vmem>>, vector<4x2xf32>
      %cst_26 = arith.constant dense<0.000000e+00> : vector<1x2xf32>
      %25 = tpu.matmul %23, %24, %cst_26 {dimension_numbers = #tpu.dot_dimension_numbers<[1], [0], [0], [1], [0, 0, 1, 1], [], []>} : vector<1x4xf32>, vector<4x2xf32>, vector<1x2xf32> -> vector<1x2xf32>
      %cst_27 = arith.constant 0.000000e+00 : f32
      %26 = vector.broadcast %cst_27 : f32 to vector<1x2xf32>
      %27 = arith.maximumf %25, %26 : vector<1x2xf32>
      %c0_28 = arith.constant 0 : index
      %c0_29 = arith.constant 0 : index
      %28 = vector.load %arg4[%c0_28, %c0_29] : memref<2x8xf32, #tpu.memory_space<vmem>>, vector<2x8xf32>
      %cst_30 = arith.constant dense<0.000000e+00> : vector<1x8xf32>
      %29 = tpu.matmul %27, %28, %cst_30 {dimension_numbers = #tpu.dot_dimension_numbers<[1], [0], [0], [1], [0, 0, 1, 1], [], []>} : vector<1x2xf32>, vector<2x8xf32>, vector<1x8xf32> -> vector<1x8xf32>
      %cst_31 = arith.constant dense<0xFF800000> : vector<1xf32>
      %30 = vector.multi_reduction <maximumf>, %29, %cst_31 [1] : vector<1x8xf32> to vector<1xf32>
      %31 = vector.shape_cast %30 : vector<1xf32> to vector<1x1xf32>
      %32 = vector.broadcast %31 : vector<1x1xf32> to vector<1x8xf32>
      %33 = arith.subf %29, %32 : vector<1x8xf32>
      %34 = math.exp %33 : vector<1x8xf32>
      %cst_32 = arith.constant dense<0.000000e+00> : vector<1xf32>
      %35 = vector.multi_reduction <add>, %34, %cst_32 [1] : vector<1x8xf32> to vector<1xf32>
      %36 = vector.shape_cast %35 : vector<1xf32> to vector<1x1xf32>
      %37 = vector.broadcast %36 : vector<1x1xf32> to vector<1x8xf32>
      %38 = arith.divf %34, %37 : vector<1x8xf32>
      %c0_33 = arith.constant 0 : index
      %c0_34 = arith.constant 0 : index
      %c0_35 = arith.constant 0 : index
      %39 = vector.load %arg5[%c0_33, %c0_34, %c0_35] : memref<1x1x8xf32, #tpu.memory_space<vmem>>, vector<1x1x8xf32>
      %40 = vector.shape_cast %39 : vector<1x1x8xf32> to vector<1x8xf32>
      %41 = vector.shape_cast %38 : vector<1x8xf32> to vector<1x1x8xf32>
      tpu.vector_store %arg5[%c0_33, %c0_34, %c0_35], %41 {strides = array<i32>} : memref<1x1x8xf32, #tpu.memory_space<vmem>>, vector<1x1x8xf32>,
    } else {
    }
    return
  }
  func.func @transform_0(%arg0: i32, %arg1: i32) -> (i32, i32, i32) {
    %c0_i32 = arith.constant 0 : i32
    %c0_i32_0 = arith.constant 0 : i32
    return %arg0, %c0_i32, %arg1 : i32, i32, i32
  }
  func.func @transform_1(%arg0: i32, %arg1: i32) -> (i32, i32) {
    %c0_i32 = arith.constant 0 : i32
    %c0_i32_0 = arith.constant 0 : i32
    %c0_i32_1 = arith.constant 0 : i32
    return %c0_i32, %c0_i32_0 : i32, i32
  }
  func.func @transform_2(%arg0: i32, %arg1: i32) -> (i32, i32) {
    %c0_i32 = arith.constant 0 : i32
    %c0_i32_0 = arith.constant 0 : i32
    %c0_i32_1 = arith.constant 0 : i32
    return %c0_i32, %c0_i32_0 : i32, i32
  }
  func.func @transform_3(%arg0: i32, %arg1: i32) -> (i32, i32, i32) {
    %c0_i32 = arith.constant 0 : i32
    %c0_i32_0 = arith.constant 0 : i32
    %c0_i32_1 = arith.constant 0 : i32
    return %arg0, %c0_i32, %c0_i32_0 : i32, i32, i32
  }
}

</mosaic_0001>

<llo_original>
// kernel: tpu_custom_call.1
$region0: #{tpu_custom_call.1}
  #allocation0 [shape = 'u32[]', space=smem, size = 0x4, offset = 0x4, fixed_abs, tag = 'smem constant byte address 0x4 - core index']
  #allocation1 [shape = 'u32[144,128]{1,0:T(1,128)}', space=vmem, size = 0x12000, scoped, tag = 'internal scratch']
  #allocation2 [shape = 'f32[1,4,128]{2,1,0:T(4,128)}', space=vmem, size = 0x800, scoped, tag = 'scratch operand']
  %s0 = inlined_call_operand.hbm [shape: f32[2,4,256], index: 0, kind: input, shape index: {}]
  %s1 = inlined_call_operand.vmem [shape: f32[4,2], index: 1, kind: input, shape index: {}]
  %s2 = inlined_call_operand.vmem [shape: f32[2,8], index: 2, kind: input, shape index: {}]
  %s3 = inlined_call_operand.hbm [shape: f32[2,1,8], index: 3, kind: output, shape index: {}]
  %s4 = sld [smem:[#allocation0]]
  $region57: #{tpu_custom_call.1} parent=0
    _
  %s6 = ssub.s32 1, %s4
  %s7 = scalar_select 0, %s6, %s4
  $region1: #{tpu_custom_call.1} parent=0
    #allocation3 [shape = 'u8[8192]{0}', space=vmem, size = 0x2000, scoped, tag = 'input window, operand 0']
    #allocation4 [shape = 's32[2]{0}', space=sflag, size = 0x8, scoped, tag = 'scoped memory for tpu_custom_call.1']
    #allocation5 [shape = 's32[2]{0}', space=sflag, size = 0x8, scoped, tag = 'scoped memory for tpu_custom_call.1']
    #allocation6 [shape = 'u8[1024]{0}', space=vmem, size = 0x400, scoped, tag = 'output window, operand 0']
    %8 = vsyncpa [#allocation4], 0
    %s9 = scalar_lea.sflag [#allocation4], 1
    %10 = vsyncpa %s9, 0
    %11 = vsyncpa [#allocation5], 0
    %s12 = scalar_lea.sflag [#allocation5], 1
    %13 = vsyncpa %s12, 0
    loop: start=0, step=1, limit=4
    $region2: #{tpu_custom_call.1} parent=1 // loop_pre_header
      _
    $region3: #{tpu_custom_call.1} parent=1 // loop_header
      %s15 = sphi 0, %s19
      %p16 = scmp.ge.s32.totalorder %s15, 4
      %s22 = sphi 0, %s34
      %s23 = sphi 0, %s30
      %s24 = sphi 0, %s22
      %s25 = sphi 0, %s23
      %s26 = sphi 0, %s24
      %s27 = sphi 0, %s25
      %s39 = sphi 0, %s41
      %s42 = sphi 0, %s39
      %s43 = sphi 0, %s42
      %s59 = sphi 0, %s43
      %s63 = sphi 0, %s63
      %s65 = sphi 0, %s63
      %s66 = sphi 0, %s65
      %s80 = sphi 0, %s66
      %s84 = sphi 0, %s84
      %s86 = sphi 0, %s84
      %s87 = sphi 0, %s86
      %s101 = sphi 0, %s87
      %s107 = sphi 0, %s109
      %s110 = sphi 0, %s107
      %s111 = sphi 0, %s110
      %s127 = sphi 0, %s111
    $region4: #{tpu_custom_call.1} parent=1 // loop_header_branch
      %18 = sbr.rel (%p16) target = $region8
    $region5: #{tpu_custom_call.1} parent=1 // loop_body
      %s20 = ssub.s32 %s15, 1
      %s21 = ssub.s32 %s15, 2
      %s28 = sadd.s32 1, %s23
      %p29 = scmp.ge.s32.totalorder %s28, 1
      %s30 = scalar_select %p29, 0, %s28
      %s31 = sadd.s32 1, %s22
      %s32 = scalar_select %p29, %s31, %s22
      %p33 = scmp.ge.s32.totalorder %s32, 2
      %s34 = scalar_select %p33, 0, %s32
      %s35 = ssub.s32 %s22, %s34
      %s36 = ssub.s32 %s23, %s30
      %s37 = sor.u32 %s35, %s36
      %p38 = scmp.eq.s32.totalorder %s37, 0
      %s40 = sadd.s32 %s39, 1
      %s41 = scalar_select %p38, %s39, %s40
      %p44 = pneg %p38
      %p45 = scmp.eq.s32.totalorder %s15, 1
      %p46 = por %p44, %p45
      %p47 = scmp.ne.s32.totalorder %s39, %s42
      %p48 = scmp.eq.s32.totalorder %s15, 0
      %p49 = por %p47, %p48
      %p50 = scmp.ne.s32.totalorder %s39, %s42
      %p51 = scmp.eq.s32.totalorder %s20, 1
      %p52 = por %p50, %p51
      %p53 = scmp.ne.s32.totalorder %s42, %s43
      %p54 = scmp.eq.s32.totalorder %s20, 0
      %p55 = por %p53, %p54
      %p56 = scmp.ne.s32.totalorder %s42, %s43
      %p57 = scmp.eq.s32.totalorder %s21, 1
      %p58 = por %p56, %p57
      %p60 = scmp.ne.s32.totalorder %s43, %s59
      %p61 = scmp.eq.s32.totalorder %s21, 0
      %p62 = por %p60, %p61
      %s64 = sadd.s32 %s63, 1
      %p67 = scmp.eq.s32.totalorder %s15, 1
      %p68 = scmp.ne.s32.totalorder %s63, %s65
      %p69 = scmp.eq.s32.totalorder %s15, 0
      %p70 = por %p68, %p69
      %p71 = scmp.ne.s32.totalorder %s63, %s65
      %p72 = scmp.eq.s32.totalorder %s20, 1
      %p73 = por %p71, %p72
      %p74 = scmp.ne.s32.totalorder %s65, %s66
      %p75 = scmp.eq.s32.totalorder %s20, 0
      %p76 = por %p74, %p75
      %p77 = scmp.ne.s32.totalorder %s65, %s66
      %p78 = scmp.eq.s32.totalorder %s21, 1
      %p79 = por %p77, %p78
      %p81 = scmp.ne.s32.totalorder %s66, %s80
      %p82 = scmp.eq.s32.totalorder %s21, 0
      %p83 = por %p81, %p82
      %s85 = sadd.s32 %s84, 1
      %p88 = scmp.eq.s32.totalorder %s15, 1
      %p89 = scmp.ne.s32.totalorder %s84, %s86
      %p90 = scmp.eq.s32.totalorder %s15, 0
      %p91 = por %p89, %p90
      %p92 = scmp.ne.s32.totalorder %s84, %s86
      %p93 = scmp.eq.s32.totalorder %s20, 1
      %p94 = por %p92, %p93
      %p95 = scmp.ne.s32.totalorder %s86, %s87
      %p96 = scmp.eq.s32.totalorder %s20, 0
      %p97 = por %p95, %p96
      %p98 = scmp.ne.s32.totalorder %s86, %s87
      %p99 = scmp.eq.s32.totalorder %s21, 1
      %p100 = por %p98, %p99
      %p102 = scmp.ne.s32.totalorder %s87, %s101
      %p103 = scmp.eq.s32.totalorder %s21, 0
      %p104 = por %p102, %p103
      %s105 = ssub.s32 %s22, %s34
      %p106 = scmp.eq.s32.totalorder %s105, 0
      %s108 = sadd.s32 %s107, 1
      %s109 = scalar_select %p106, %s107, %s108
      %p112 = pneg %p106
      %p113 = scmp.eq.s32.totalorder %s15, 1
      %p114 = por %p112, %p113
      %p115 = scmp.ne.s32.totalorder %s107, %s110
      %p116 = scmp.eq.s32.totalorder %s15, 0
      %p117 = por %p115, %p116
      %p118 = scmp.ne.s32.totalorder %s107, %s110
      %p119 = scmp.eq.s32.totalorder %s20, 1
      %p120 = por %p118, %p119
      %p121 = scmp.ne.s32.totalorder %s110, %s111
      %p122 = scmp.eq.s32.totalorder %s20, 0
      %p123 = por %p121, %p122
      %p124 = scmp.ne.s32.totalorder %s110, %s111
      %p125 = scmp.eq.s32.totalorder %s21, 1
      %p126 = por %p124, %p125
      %p128 = scmp.ne.s32.totalorder %s111, %s127
      %p129 = scmp.eq.s32.totalorder %s21, 0
      %p130 = por %p128, %p129
      %p131 = scmp.le.s32.totalorder 1, %s15
      %p132 = scmp.lt.s32.totalorder %s15, 3
      %p133 = pnand %p131, %p132
      %p134 = pneg %p133
      // Predicated region
      $region9: #{tpu_custom_call.1} parent=5 // pred_check
        _
      $region10: #{tpu_custom_call.1} parent=5 // pred_check_branch
        %136 = sbr.rel (%p133) target = $region12
      $region11: #{tpu_custom_call.1} parent=5 // pred_region
        %s137 = ssub.s32 %s15, 1
        // Predicated region
        $region13: #{tpu_custom_call.1} parent=11 // pred_check
          %p138 = pneg %p76
        $region14: #{tpu_custom_call.1} parent=11 // pred_check_branch
          %140 = sbr.rel (%p138) target = $region16
        $region15: #{tpu_custom_call.1} parent=11 // pred_region
          _
        $region16: #{tpu_custom_call.1} parent=11 // pred_fallthru
          _
        // Predicated region
        $region17: #{tpu_custom_call.1} parent=11 // pred_check
          %p141 = pneg %p97
        $region18: #{tpu_custom_call.1} parent=11 // pred_check_branch
          %143 = sbr.rel (%p141) target = $region20
        $region19: #{tpu_custom_call.1} parent=11 // pred_region
          _
        $region20: #{tpu_custom_call.1} parent=11 // pred_fallthru
          _
      $region12: #{tpu_custom_call.1} parent=5 // pred_fallthru
        _
      %p144 = scmp.lt.s32.totalorder %s15, 2
      // Predicated region
      $region21: #{tpu_custom_call.1} parent=5 // pred_check
        %p145 = pneg %p144
      $region22: #{tpu_custom_call.1} parent=5 // pred_check_branch
        %147 = sbr.rel (%p145) target = $region24
      $region23: #{tpu_custom_call.1} parent=5 // pred_region
        // Predicated region
        $region25: #{tpu_custom_call.1} parent=23 // pred_check
          %p148 = pneg %p49
        $region26: #{tpu_custom_call.1} parent=23 // pred_check_branch
          %150 = sbr.rel (%p148) target = $region28
        $region27: #{tpu_custom_call.1} parent=23 // pred_region
          %s151 = sand.u32 %s39, 1
          %s152 = scalar_lea.sflag [#allocation4], %s151
          %s153 = sand.u32 %s39, 1
          %s154 = smul.addr %s153, 8
          %s155 = scalar_lea.vmem [#allocation3], %s154
          %s156 = smul.u32 2, %s23
          %s158 = ssub.s32 128, 128
          %159 = vsyncadd %s152, %s158
          %s160 = smul.addr %s22, 2
          %s161 = sadd.s32 %s156, %s160
          %s162 = smul.addr %s161, 64
          %s163 = scalar_lea.hbm %s0, %s162
          %s165 = sshll.u32 %s155, 4
          %s166 = int_to_ptr.vmem [resolvable:$true] %s165
          %168 = dma.hbm_to_vmem [thread:$0]  %s163, 128, %s166, %s152
        $region28: #{tpu_custom_call.1} parent=23 // pred_fallthru
          _
      $region24: #{tpu_custom_call.1} parent=5 // pred_fallthru
        _
      %p169 = scmp.le.s32.totalorder 1, %s15
      %p170 = scmp.lt.s32.totalorder %s15, 3
      %p171 = pnand %p169, %p170
      %p172 = pneg %p171
      // Predicated region
      $region29: #{tpu_custom_call.1} parent=5 // pred_check
        _
      $region30: #{tpu_custom_call.1} parent=5 // pred_check_branch
        %174 = sbr.rel (%p171) target = $region32
      $region31: #{tpu_custom_call.1} parent=5 // pred_region
        %s175 = ssub.s32 %s15, 1
        %s176 = sand.u32 %s42, 1
        %s177 = scalar_lea.sflag [#allocation4], %s176
        %s178 = sand.u32 %s42, 1
        %s179 = smul.addr %s178, 8
        %s180 = scalar_lea.vmem [#allocation3], %s179
        // Predicated region
        $region33: #{tpu_custom_call.1} parent=31 // pred_check
          %p181 = pneg %p55
        $region34: #{tpu_custom_call.1} parent=31 // pred_check_branch
          %183 = sbr.rel (%p181) target = $region36
        $region35: #{tpu_custom_call.1} parent=31 // pred_region
          %184 = dma.done %s177, 128
        $region36: #{tpu_custom_call.1} parent=31 // pred_fallthru
          _
        %s185 = sand.u32 %s42, 1
        %s186 = scalar_lea.sflag [#allocation4], %s185
        %s187 = sand.u32 %s42, 1
        %s188 = smul.addr %s187, 8
        %s189 = scalar_lea.vmem [#allocation3], %s188
        %p190 = pneg %p55
        %p191 = pneg %p52
        %p192 = pneg %p76
        %p193 = pneg %p73
        %p194 = pneg %p97
        %p195 = pneg %p94
        %p196 = pneg %p123
        %p197 = pneg %p120
        %s198 = sand.u32 %s110, 1
        %s199 = scalar_lea.sflag [#allocation5], %s198
        %s200 = sand.u32 %s110, 1
        %s201 = scalar_lea.vmem [#allocation6], %s200
        %s202 = smul.u32 2, %s25
        %p203 = scmp.eq.s32.totalorder %s25, 0
        // Predicated region
        $region37: #{tpu_custom_call.1} parent=31 // pred_check
          %p204 = pneg %p203
        $region38: #{tpu_custom_call.1} parent=31 // pred_check_branch
          %206 = sbr.rel (%p204) target = $region40
        $region39: #{tpu_custom_call.1} parent=31 // pred_region
          %207 = vst [vmem:[#allocation2] sm:$0xf] 0.0
        $region40: #{tpu_custom_call.1} parent=31 // pred_fallthru
          _
        %v208 = vld [vmem:[%s180] sm:$0xf]
        %v209 = vld [vmem:[#allocation2] sm:$0xf]
        %v210 = vadd.f32 %v209, %v208
        %211 = vst [vmem:[#allocation2] sm:$0xf] %v210
        %s212 = scalar_lea.vmem %s180, 4 [#allocation3]
        %v213 = vld [vmem:[%s212] sm:$0xf]
        %v214 = vld [vmem:[#allocation2] sm:$0xf]
        %v215 = vadd.f32 %v214, %v213
        %216 = vst [vmem:[#allocation2] sm:$0xf] %v215
        // Predicated region
        $region41: #{tpu_custom_call.1} parent=31 // pred_check
          %p217 = pneg %p203
        $region42: #{tpu_custom_call.1} parent=31 // pred_check_branch
          %219 = sbr.rel (%p217) target = $region44
        $region43: #{tpu_custom_call.1} parent=31 // pred_region
          %v220 = vld [vmem:[#allocation2] sm:$0xf]
          %vm221 = vcmask 1043456
          %v222 = vsel %vm221, %v220, 0.0
          %223 = vadd.xlane.f32.xlu0 %v222
          %v224 = vpop.xlane.xlu0 %223
          %v225 = vmul.f32 %v224, 0.00390625
          %v226 = vld [vmem:[%s1] sm:$0xf]
          %v228 = vlaneseq
          %v229 = vand.u32 %v228, 127
          %v230 = vlaneseq
          %v231 = vshrl.u32 %v230, 7
          %v232 = vsub.s32 %v229, %v231
          %v233 = vrot.slane %v225, %v232
          %vm234 = vcmask 31744
          %v235 = vsel %vm234, %v233, 0
          %v238 = vsel %vm221, %v226, 0
          %240 = vmatprep.subr.mxu0 0.0
          %241 = vmatpush1.msra.mxu0 %v238
          %242 = vmatprep.subr.mxu0 0.0
          %243 = vmatpush1.msra.mxu0 0.0
          %244 = vmatprep.subr.mxu0 0.0
          %245 = vmatpush1.msra.mxu0 0.0
          %246 = vmatprep.subr.mxu0 0.0
          %247 = vmatpush1.msra.mxu0 0.0
          %248 = vmatprep.subr.mxu0 0.0
          %249 = vmatpush1.msra.mxu0 0.0
          %250 = vmatprep.subr.mxu0 0.0
          %251 = vmatpush1.msra.mxu0 0.0
          %252 = vmatprep.subr.mxu0 0.0
          %253 = vmatpush1.msra.mxu0 0.0
          %254 = vmatprep.subr.mxu0 0.0
          %255 = vmatpush1.msra.mxu0 0.0
          %256 = vmatprep.subr.mxu0 0.0
          %257 = vmatpush1.msra.mxu0 0.0
          %258 = vmatprep.subr.mxu0 0.0
          %259 = vmatpush1.msra.mxu0 0.0
          %260 = vmatprep.subr.mxu0 0.0
          %261 = vmatpush1.msra.mxu0 0.0
          %262 = vmatprep.subr.mxu0 0.0
          %263 = vmatpush1.msra.mxu0 0.0
          %264 = vmatprep.subr.mxu0 0.0
          %265 = vmatpush1.msra.mxu0 0.0
          %266 = vmatprep.subr.mxu0 0.0
          %267 = vmatpush1.msra.mxu0 0.0
          %268 = vmatprep.subr.mxu0 0.0
          %269 = vmatpush1.msra.mxu0 0.0
          %270 = vmatprep.subr.mxu0 0.0
          %271 = vmatpush1.msra.mxu0 0.0
          %272 = vmatprep.subr.mxu0 0.0
          %273 = vmatpush1.msra.mxu0 0.0
          %274 = vmatprep.subr.mxu0 0.0
          %275 = vmatpush1.msra.mxu0 0.0
          %276 = vmatprep.subr.mxu0 0.0
          %277 = vmatpush1.msra.mxu0 0.0
          %278 = vmatprep.subr.mxu0 0.0
          %279 = vmatpush1.msra.mxu0 0.0
          %280 = vmatprep.subr.mxu0 0.0
          %281 = vmatpush1.msra.mxu0 0.0
          %282 = vmatprep.subr.mxu0 0.0
          %283 = vmatpush1.msra.mxu0 0.0
          %284 = vmatprep.subr.mxu0 0.0
          %285 = vmatpush1.msra.mxu0 0.0
          %286 = vmatprep.subr.mxu0 0.0
          %287 = vmatpush1.msra.mxu0 0.0
          %288 = vmatprep.subr.mxu0 0.0
          %289 = vmatpush1.msra.mxu0 0.0
          %290 = vmatprep.subr.mxu0 0.0
          %291 = vmatpush1.msra.mxu0 0.0
          %292 = vmatprep.subr.mxu0 0.0
          %293 = vmatpush1.msra.mxu0 0.0
          %294 = vmatprep.subr.mxu0 0.0
          %295 = vmatpush1.msra.mxu0 0.0
          %296 = vmatprep.subr.mxu0 0.0
          %297 = vmatpush1.msra.mxu0 0.0
          %298 = vmatprep.subr.mxu0 0.0
          %299 = vmatpush1.msra.mxu0 0.0
          %300 = vmatprep.subr.mxu0 0.0
          %301 = vmatpush1.msra.mxu0 0.0
          %302 = vmatprep.subr.mxu0 0.0
          %303 = vmatpush1.msra.mxu0 0.0
          %304 = vmatprep.mubr.f32.mxu0 0.0
          %305 = vmatmul.mubr.f32.gmra.mrb[0].mxu0 %v235
          %v306 = vpop.f32.mrb[0].mxu0
          %v307 = vadd.f32 0.0, %v306
          %v308 = vpop.f32.mrb[0].mxu0
          %309 = vdwg.mxu0
          %v310 = vmax.f32 %v307, 0.0
          %v311 = vld [vmem:[%s2] sm:$0x3]
          %vm312 = vcmask 15360
          %v314 = vsel %vm312, %v310, 0
          %vm316 = vcmask 1041408
          %v318 = vsel %vm316, %v311, 0
          %320 = vmatprep.subr.mxu0 0.0
          %321 = vmatpush1.msra.mxu0 %v318
          %322 = vmatprep.subr.mxu0 0.0
          %323 = vmatpush1.msra.mxu0 0.0
          %324 = vmatprep.subr.mxu0 0.0
          %325 = vmatpush1.msra.mxu0 0.0
          %326 = vmatprep.subr.mxu0 0.0
          %327 = vmatpush1.msra.mxu0 0.0
          %328 = vmatprep.subr.mxu0 0.0
          %329 = vmatpush1.msra.mxu0 0.0
          %330 = vmatprep.subr.mxu0 0.0
          %331 = vmatpush1.msra.mxu0 0.0
          %332 = vmatprep.subr.mxu0 0.0
          %333 = vmatpush1.msra.mxu0 0.0
          %334 = vmatprep.subr.mxu0 0.0
          %335 = vmatpush1.msra.mxu0 0.0
          %336 = vmatprep.subr.mxu0 0.0
          %337 = vmatpush1.msra.mxu0 0.0
          %338 = vmatprep.subr.mxu0 0.0
          %339 = vmatpush1.msra.mxu0 0.0
          %340 = vmatprep.subr.mxu0 0.0
          %341 = vmatpush1.msra.mxu0 0.0
          %342 = vmatprep.subr.mxu0 0.0
          %343 = vmatpush1.msra.mxu0 0.0
          %344 = vmatprep.subr.mxu0 0.0
          %345 = vmatpush1.msra.mxu0 0.0
          %346 = vmatprep.subr.mxu0 0.0
          %347 = vmatpush1.msra.mxu0 0.0
          %348 = vmatprep.subr.mxu0 0.0
          %349 = vmatpush1.msra.mxu0 0.0
          %350 = vmatprep.subr.mxu0 0.0
          %351 = vmatpush1.msra.mxu0 0.0
          %352 = vmatprep.subr.mxu0 0.0
          %353 = vmatpush1.msra.mxu0 0.0
          %354 = vmatprep.subr.mxu0 0.0
          %355 = vmatpush1.msra.mxu0 0.0
          %356 = vmatprep.subr.mxu0 0.0
          %357 = vmatpush1.msra.mxu0 0.0
          %358 = vmatprep.subr.mxu0 0.0
          %359 = vmatpush1.msra.mxu0 0.0
          %360 = vmatprep.subr.mxu0 0.0
          %361 = vmatpush1.msra.mxu0 0.0
          %362 = vmatprep.subr.mxu0 0.0
          %363 = vmatpush1.msra.mxu0 0.0
          %364 = vmatprep.subr.mxu0 0.0
          %365 = vmatpush1.msra.mxu0 0.0
          %366 = vmatprep.subr.mxu0 0.0
          %367 = vmatpush1.msra.mxu0 0.0
          %368 = vmatprep.subr.mxu0 0.0
          %369 = vmatpush1.msra.mxu0 0.0
          %370 = vmatprep.subr.mxu0 0.0
          %371 = vmatpush1.msra.mxu0 0.0
          %372 = vmatprep.subr.mxu0 0.0
          %373 = vmatpush1.msra.mxu0 0.0
          %374 = vmatprep.subr.mxu0 0.0
          %375 = vmatpush1.msra.mxu0 0.0
          %376 = vmatprep.subr.mxu0 0.0
          %377 = vmatpush1.msra.mxu0 0.0
          %378 = vmatprep.subr.mxu0 0.0
          %379 = vmatpush1.msra.mxu0 0.0
          %380 = vmatprep.subr.mxu0 0.0
          %381 = vmatpush1.msra.mxu0 0.0
          %382 = vmatprep.subr.mxu0 0.0
          %383 = vmatpush1.msra.mxu0 0.0
          %384 = vmatprep.mubr.f32.mxu0 0.0
          %385 = vmatmul.mubr.f32.gmra.mrb[0].mxu0 %v314
          %v386 = vpop.f32.mrb[0].mxu0
          %v387 = vadd.f32 0.0, %v386
          %v388 = vpop.f32.mrb[0].mxu0
          %389 = vdwg.mxu0
          %vm390 = vcmask 57344
          %v391 = vsel %vm390, %v387, -inf
          %392 = vmax.xlane.f32.xlu0 %v391
          %v393 = vpop.xlane.xlu0 %392
          %v394 = vsub.f32 %v387, %v393
          %v395 = vmul.f32 %v394, 1.442695
          %v396 = vpow.pop %v395
          %v397 = vsel %vm390, %v396, 0.0
          %398 = vadd.xlane.f32.xlu0 %v397
          %v399 = vpop.xlane.xlu0 %398
          %v400 = vrcp.pop %v399
          %v401 = vmul.f32 %v396, %v400
          %402 = vst.msk [vmem:[%s201] sm:$0x1] %vm390, %v401
        $region44: #{tpu_custom_call.1} parent=31 // pred_fallthru
          _
        %s403 = sand.u32 %s110, 1
        %s404 = scalar_lea.sflag [#allocation5], %s403
        %s405 = sand.u32 %s110, 1
        %s406 = scalar_lea.vmem [#allocation6], %s405
        // Predicated region
        $region45: #{tpu_custom_call.1} parent=31 // pred_check
          %p407 = pneg %p120
        $region46: #{tpu_custom_call.1} parent=31 // pred_check_branch
          %409 = sbr.rel (%p407) target = $region48
        $region47: #{tpu_custom_call.1} parent=31 // pred_region
          %s411 = ssub.s32 16, 16
          %412 = vsyncadd %s404, %s411
          %s413 = smul.addr %s24, 16
          %s414 = scalar_lea.hbm %s3, %s413
          %s416 = sshll.u32 %s406, 4
          %s417 = int_to_ptr.vmem [resolvable:$true] %s416
          %419 = dma.vmem_to_hbm [thread:$0]  %s417, 16, %s414, %s404
        $region48: #{tpu_custom_call.1} parent=31 // pred_fallthru
          _
      $region32: #{tpu_custom_call.1} parent=5 // pred_fallthru
        _
      %p420 = scmp.le.s32.totalorder 2, %s15
      // Predicated region
      $region49: #{tpu_custom_call.1} parent=5 // pred_check
        %p421 = pneg %p420
      $region50: #{tpu_custom_call.1} parent=5 // pred_check_branch
        %423 = sbr.rel (%p421) target = $region52
      $region51: #{tpu_custom_call.1} parent=5 // pred_region
        %s424 = ssub.s32 %s15, 2
        // Predicated region
        $region53: #{tpu_custom_call.1} parent=51 // pred_check
          %p425 = pneg %p126
        $region54: #{tpu_custom_call.1} parent=51 // pred_check_branch
          %427 = sbr.rel (%p425) target = $region56
        $region55: #{tpu_custom_call.1} parent=51 // pred_region
          %s428 = sand.u32 %s111, 1
          %s429 = scalar_lea.sflag [#allocation5], %s428
          %s430 = sand.u32 %s111, 1
          %s431 = scalar_lea.vmem [#allocation6], %s430
          %432 = dma.done %s429, 16
        $region56: #{tpu_custom_call.1} parent=51 // pred_fallthru
          _
      $region52: #{tpu_custom_call.1} parent=5 // pred_fallthru
        _
    $region6: #{tpu_custom_call.1} parent=1 // loop_footer
      %s19 = sadd.s32 1, %s15
    $region7: #{tpu_custom_call.1} parent=1 // loop_footer_branch
      %14 = sbr.rel target = $region3
    $region8: #{tpu_custom_call.1} parent=1 // loop_exit
      _
    %433 = vsyncpa [#allocation4], 1
    %s434 = scalar_lea.sflag [#allocation4], 1
    %435 = vsyncpa %s434, 1
    %436 = vsyncpa [#allocation5], 1
    %s437 = scalar_lea.sflag [#allocation5], 1
    %438 = vsyncpa %s437, 1

</llo_original>
